<compile_context>
chip_gen: v5e
topology: v5e:2x2
jax: 0.10.0
libtpu: 0.0.40
codegen_flags: <defaults>
</compile_context>

<pallas_src>
import functools

import jax
import jax.numpy as jnp
from jax.experimental import pallas as pl
from jax.experimental.pallas import tpu as pltpu


# --------------------------------------------------------------------------- #
# helpers
# --------------------------------------------------------------------------- #
def _round_up(n, m):
    return ((n + m - 1) // m) * m


def _act(x, act):
    if act == "silu":
        return x * jax.nn.sigmoid(x)
    return jnp.maximum(x, 0.0)


def _block_diag(blk, n):
    """n copies of `blk` along the diagonal (built once, at parameter-pack time)."""
    r, c = blk.shape
    out = jnp.zeros((n * r, n * c), blk.dtype)
    for g in range(n):
        out = out.at[g * r:(g + 1) * r, g * c:(g + 1) * c].set(blk)
    return out


def _pad2(a, rows, cols):
    return jnp.pad(a, ((0, rows - a.shape[0]), (0, cols - a.shape[1])))


# --------------------------------------------------------------------------- #
# kernel
# --------------------------------------------------------------------------- #
def _rpe_kernel(b_ref, e_ref, vec_ref, w12_ref, g_ref, w3_ref, b3_ref, out_ref,
                *, residual, act, inv_group, mxu_dtype):
    f32, bf16 = jnp.float32, jnp.bfloat16

    def split_dot(x, m01):
        # Precise x @ m for a {0,1}-valued matrix m (stored bf16): split x into
        # two bf16 terms (hi + lo captures ~16 mantissa bits).  Products with
        # 0/1 are exact and accumulation is f32, so the result is f32-accurate
        # regardless of how the hardware handles f32 matmuls.
        hi = x.astype(bf16)
        lo = (x - hi.astype(f32)).astype(bf16)
        return (jnp.dot(hi, m01, preferred_element_type=f32)
                + jnp.dot(lo, m01, preferred_element_type=f32))

    # Stacked row vectors, each (1, Dp), lane-tiled per group:
    #   [w_proj, b_proj, b1, b2, ln_gamma, ln_beta]
    wp, bp, b1, b2, gam, bet = [vec_ref[i:i + 1, :] for i in range(6)]

    # --- pos_proj: scatter each packed bias to its pos_dim-lane group (0/1
    #     matmul, K=8), then Linear(1 -> pos_dim) is a VPU broadcast mul-add.
    pos = split_dot(b_ref[...].astype(f32), e_ref[...]) * wp + bp      # (TR, Dp)

    def layer(p, w, bias):
        h = jnp.dot(_act(p, act).astype(mxu_dtype), w,
                    preferred_element_type=f32) + bias
        return p + h if residual else h

    pos = layer(pos, w12_ref[0], b1)          # pos1: act -> Linear (block-diag)
    pos = layer(pos, w12_ref[1], b2)          # pos2: act -> Linear (block-diag)

    # --- pos3: grouped LayerNorm (stats per pos_dim-lane group) -> act -> Linear
    gmat = g_ref[...]                          # {0,1} group-sum matrix (bf16)
    mean = split_dot(pos, gmat) * inv_group
    diff = pos - mean
    var = split_dot(diff * diff, gmat) * inv_group
    xn = diff * jax.lax.rsqrt(var + 1e-5) * gam + bet
    out = jnp.dot(_act(xn, act).astype(mxu_dtype), w3_ref[...],
                  preferred_element_type=f32) + b3_ref[...]
    out_ref[...] = out.astype(out_ref.dtype)


# --------------------------------------------------------------------------- #
# parameter packing (done once) + forward wrapper
# --------------------------------------------------------------------------- #
def pack_rpe_params(params, *, mxu_dtype=jnp.bfloat16):
    """Pack/pad parameters for the row-packed kernel.  Call once, reuse."""
    f32 = jnp.float32
    pos_dim = params["w_proj"].shape[1]
    outdim = params["w3"].shape[1]

    pack = max(1, 128 // pos_dim)              # logical rows per 128-lane row
    dp = _round_up(pack * pos_dim, 128)        # packed (lane-dense) feature axis
    op = pack * outdim                         # packed output axis (all real data)
    kp = _round_up(pack, 8)                    # packed-bias width (sublane aligned)

    def tile_row(v):                           # (1, pos_dim) -> (1, dp)
        return _pad2(jnp.tile(jnp.asarray(v, f32), (1, pack)), 1, dp)

    vecs = jnp.concatenate(
        [tile_row(params["w_proj"]), tile_row(params["b_proj"]),
         tile_row(params["b1"]), tile_row(params["b2"]),
         tile_row(params["ln_g"]), tile_row(params["ln_b"])], axis=0)      # (6, dp)

    expand = _pad2(_block_diag(jnp.ones((1, pos_dim), f32), pack),
                   kp, dp).astype(jnp.bfloat16)                            # (kp, dp)
    gsum = _pad2(_block_diag(jnp.ones((pos_dim, pos_dim), f32), pack),
                 dp, dp).astype(jnp.bfloat16)                              # (dp, dp)
    w12 = jnp.stack(
        [_pad2(_block_diag(jnp.asarray(params["w1"], f32), pack), dp, dp),
         _pad2(_block_diag(jnp.asarray(params["w2"], f32), pack), dp, dp)],
        axis=0).astype(mxu_dtype)                                          # (2, dp, dp)
    w3 = _pad2(_block_diag(jnp.asarray(params["w3"], f32), pack),
               dp, op).astype(mxu_dtype)                                   # (dp, op)
    b3 = jnp.tile(jnp.asarray(params["b3"], f32), (1, pack))               # (1, op)

    return {
        "expand": expand, "vecs": vecs, "w12": w12, "gsum": gsum,
        "w3": w3, "b3": b3,
        "meta": dict(pos_dim=pos_dim, outdim=outdim, pack=pack,
                     dp=dp, op=op, kp=kp, mxu_dtype=mxu_dtype),
    }


def rpe_forward(biases, packed, *, residual=True, act="relu", tile_rows=None):
    """biases: (L, 1) float.  Returns (L, outdim) float32."""
    meta = packed["meta"]
    pos_dim, outdim = meta["pos_dim"], meta["outdim"]
    pack, dp, op, kp = meta["pack"], meta["dp"], meta["op"], meta["kp"]
    mxu_dtype = meta["mxu_dtype"]

    L = biases.shape[0]
    Lr = pl.cdiv(L, pack)                      # packed rows carrying real data

    # Tile size (in packed rows): one grid step when everything fits (no forced
    # split on single-TC v5e/v6e); cap scales with dp so temporaries stay well
    # inside the VMEM budget on v7x.  Larger L splits and "parallel" lets v7x
    # shard the row axis across both TensorCores.
    if tile_rows is None:
        cap = max(512, (2048 * 128) // dp)
        tile_rows = min(_round_up(max(Lr, 8), 8), cap)
    tile_rows = _round_up(tile_rows, 8)
    n_tiles = pl.cdiv(Lr, tile_rows)
    Lp_r = n_tiles * tile_rows

    # Lane-pack the biases: (L, 1) -> (Lp_r, kp), `pack` real values per row.
    flat = jnp.pad(jnp.ravel(biases.astype(jnp.float32)), (0, Lp_r * pack - L))
    b_in = jnp.pad(flat.reshape(Lp_r, pack), ((0, 0), (0, kp - pack)))

    kernel = functools.partial(_rpe_kernel, residual=residual, act=act,
                               inv_group=1.0 / pos_dim, mxu_dtype=mxu_dtype)

    itemsize = jnp.dtype(mxu_dtype).itemsize
    flops_per_row = 4 * kp * dp + 12 * dp * dp + 2 * dp * op + 30 * dp
    cost = pl.CostEstimate(
        flops=int(Lp_r * flops_per_row),
        transcendentals=int(Lp_r * dp * (4 if act == "silu" else 1)),
        bytes_accessed=int(Lp_r * kp * 4 + Lp_r * op * 4
                           + kp * dp * 2 + 6 * dp * 4 + 2 * dp * dp * itemsize
                           + dp * dp * 2 + dp * op * itemsize + op * 4),
    )

    out_packed = pl.pallas_call(
        kernel,
        out_shape=jax.ShapeDtypeStruct((Lp_r, op), jnp.float32),
        grid_spec=pltpu.PrefetchScalarGridSpec(
            num_scalar_prefetch=0,
            grid=(n_tiles,),
            in_specs=[
                pl.BlockSpec((tile_rows, kp), lambda i: (i, 0)),     # packed biases
                pl.BlockSpec((kp, dp), lambda i: (0, 0)),            # bias expand (0/1)
                pl.BlockSpec((6, dp), lambda i: (0, 0)),             # row-vector stack
                pl.BlockSpec((2, dp, dp), lambda i: (0, 0, 0)),      # w1, w2 (block-diag)
                pl.BlockSpec((dp, dp), lambda i: (0, 0)),            # group-sum (0/1)
                pl.BlockSpec((dp, op), lambda i: (0, 0)),            # w3 (block-diag)
                pl.BlockSpec((1, op), lambda i: (0, 0)),             # b3 (tiled)
            ],
            out_specs=pl.BlockSpec((tile_rows, op), lambda i: (i, 0)),
        ),
        compiler_params=pltpu.CompilerParams(
            dimension_semantics=("parallel",),
            vmem_limit_bytes=32 * 1024 * 1024),
        cost_estimate=cost,
    )(b_in, packed["expand"], packed["vecs"], packed["w12"], packed["gsum"],
      packed["w3"], packed["b3"])

    # (Lp_r, pack*outdim) -> (Lp_r*pack, outdim) is order-preserving (row-major).
    return out_packed.reshape(Lp_r * pack, outdim)[:L]


# --------------------------------------------------------------------------- #
# pure-JAX reference mirroring the PyTorch module
# --------------------------------------------------------------------------- #
def rpe_reference(biases, params, *, residual=True, act="relu",
                  mxu_dtype=jnp.float32):
    def a(x):
        return x * jax.nn.sigmoid(x) if act == "silu" else jnp.maximum(x, 0.0)

    def mm(x, w):
        return jnp.dot(x.astype(mxu_dtype), w.astype(mxu_dtype),
                       preferred_element_type=jnp.float32)

    pos = biases * params["w_proj"] + params["b_proj"]        # Linear(1 -> pos_dim)
    h = mm(a(pos), params["w1"]) + params["b1"]
    pos = pos + h if residual else h
    h = mm(a(pos), params["w2"]) + params["b2"]
    pos = pos + h if residual else h
    mean = jnp.mean(pos, axis=-1, keepdims=True)
    var = jnp.mean(jnp.square(pos - mean), axis=-1, keepdims=True)
    xn = (pos - mean) * jax.lax.rsqrt(var + 1e-5)
    xn = xn * params["ln_g"] + params["ln_b"]
    return mm(a(xn), params["w3"]) + params["b3"]


def init_params(key, pos_dim, outdim):
    ks = jax.random.split(key, 8)
    scale = lambda fan_in: 1.0 / jnp.sqrt(jnp.float32(fan_in))
    return {
        "w_proj": jax.random.normal(ks[0], (1, pos_dim), jnp.float32) * scale(1),
        "b_proj": jax.random.normal(ks[1], (1, pos_dim), jnp.float32) * 0.01,
        "w1": jax.random.normal(ks[2], (pos_dim, pos_dim), jnp.float32) * scale(pos_dim),
        "b1": jax.random.normal(ks[3], (1, pos_dim), jnp.float32) * 0.01,
        "w2": jax.random.normal(ks[4], (pos_dim, pos_dim), jnp.float32) * scale(pos_dim),
        "b2": jax.random.normal(ks[5], (1, pos_dim), jnp.float32) * 0.01,
        "ln_g": jnp.ones((1, pos_dim), jnp.float32),
        "ln_b": jnp.zeros((1, pos_dim), jnp.float32),
        "w3": jax.random.normal(ks[6], (pos_dim, outdim), jnp.float32) * scale(pos_dim),
        "b3": jax.random.normal(ks[7], (1, outdim), jnp.float32) * 0.01,
    }


if __name__ == "__main__":
    key = jax.random.PRNGKey(0)
    k_in, k_in2, k_par = jax.random.split(key, 3)

    L, pos_dim, outdim = 256, 32, 16
    biases = jax.random.normal(k_in, (L, 1), jnp.float32)     # scalar rel. positions
    params = init_params(k_par, pos_dim, outdim)

    # --- exact path (f32 MXU operands): validates packing / grouped LN / residual
    packed_f32 = pack_rpe_params(params, mxu_dtype=jnp.float32)

    out = jax.block_until_ready(rpe_forward(biases, packed_f32,
                                            residual=True, act="relu"))
    ref = rpe_reference(biases, params, residual=True, act="relu")
    assert out.shape == (L, outdim)
    assert jnp.allclose(out, ref, atol=2e-4, rtol=2e-4), "mismatch (relu/residual, f32)"

    out2 = jax.block_until_ready(rpe_forward(biases, packed_f32,
                                             residual=False, act="silu"))
    ref2 = rpe_reference(biases, params, residual=False, act="silu")
    assert jnp.allclose(out2, ref2, atol=2e-4, rtol=2e-4), "mismatch (silu/no-res, f32)"

    # odd L (not a multiple of the per-lane-row packing factor)
    L2 = 100
    biases2 = jax.random.normal(k_in2, (L2, 1), jnp.float32)
    out3 = jax.block_until_ready(rpe_forward(biases2, packed_f32,
                                             residual=True, act="relu"))
    ref3 = rpe_reference(biases2, params, residual=True, act="relu")
    assert out3.shape == (L2, outdim)
    assert jnp.allclose(out3, ref3, atol=2e-4, rtol=2e-4), "mismatch (odd L, f32)"

    # --- fast path (default, bf16 MXU operands; LN / bias math stays f32) ---
    packed_bf16 = pack_rpe_params(params)                     # mxu_dtype=bfloat16
    out4 = jax.block_until_ready(rpe_forward(biases, packed_bf16,
                                             residual=True, act="relu"))
    assert jnp.allclose(out4, ref, atol=3e-2, rtol=3e-2), "mismatch (bf16 MXU path)"

    print("KERNEL_OK")
</pallas_src>

<mosaic_0001>
module attributes {stable_mosaic.version = 11 : i64} {
  func.func @_rpe_kernel(%arg0: i32, %arg1: memref<64x8xf32, #tpu.memory_space<vmem>>, %arg2: memref<8x128xbf16, #tpu.memory_space<vmem>>, %arg3: memref<6x128xf32, #tpu.memory_space<vmem>>, %arg4: memref<2x128x128xf32, #tpu.memory_space<vmem>>, %arg5: memref<128x128xbf16, #tpu.memory_space<vmem>>, %arg6: memref<128x64xf32, #tpu.memory_space<vmem>>, %arg7: memref<1x64xf32, #tpu.memory_space<vmem>>, %arg8: memref<64x64xf32, #tpu.memory_space<vmem>>) attributes {dimension_semantics = [#tpu.dimension_semantics<parallel>], iteration_bounds = array<i64: 1>, scalar_prefetch = 0 : i64, scratch_operands = 0 : i64, tpu.core_type = #tpu.core_type<tc>, window_params = [{transform_indices = @transform_0, window_bounds = array<i64: 64, 8>}, {pipeline_mode = #tpu.pipeline_mode<synchronous>, transform_indices = @transform_1, window_bounds = array<i64: 8, 128>}, {pipeline_mode = #tpu.pipeline_mode<synchronous>, transform_indices = @transform_2, window_bounds = array<i64: 6, 128>}, {pipeline_mode = #tpu.pipeline_mode<synchronous>, transform_indices = @transform_3, window_bounds = array<i64: 2, 128, 128>}, {pipeline_mode = #tpu.pipeline_mode<synchronous>, transform_indices = @transform_4, window_bounds = array<i64: 128, 128>}, {pipeline_mode = #tpu.pipeline_mode<synchronous>, transform_indices = @transform_5, window_bounds = array<i64: 128, 64>}, {pipeline_mode = #tpu.pipeline_mode<synchronous>, transform_indices = @transform_6, window_bounds = array<i64: 1, 64>}, {transform_indices = @transform_7, window_bounds = array<i64: 64, 64>}]} {
    %c0 = arith.constant 0 : index
    %c0_0 = arith.constant 0 : index
    %0 = vector.load %arg3[%c0, %c0_0] : memref<6x128xf32, #tpu.memory_space<vmem>>, vector<1x128xf32>
    %c1 = arith.constant 1 : index
    %c0_1 = arith.constant 0 : index
    %1 = vector.load %arg3[%c1, %c0_1] : memref<6x128xf32, #tpu.memory_space<vmem>>, vector<1x128xf32>
    %c2 = arith.constant 2 : index
    %c0_2 = arith.constant 0 : index
    %2 = vector.load %arg3[%c2, %c0_2] : memref<6x128xf32, #tpu.memory_space<vmem>>, vector<1x128xf32>
    %c3 = arith.constant 3 : index
    %c0_3 = arith.constant 0 : index
    %3 = vector.load %arg3[%c3, %c0_3] : memref<6x128xf32, #tpu.memory_space<vmem>>, vector<1x128xf32>
    %c4 = arith.constant 4 : index
    %c0_4 = arith.constant 0 : index
    %4 = vector.load %arg3[%c4, %c0_4] : memref<6x128xf32, #tpu.memory_space<vmem>>, vector<1x128xf32>
    %c5 = arith.constant 5 : index
    %c0_5 = arith.constant 0 : index
    %5 = vector.load %arg3[%c5, %c0_5] : memref<6x128xf32, #tpu.memory_space<vmem>>, vector<1x128xf32>
    %c0_6 = arith.constant 0 : index
    %c0_7 = arith.constant 0 : index
    %6 = vector.load %arg1[%c0_6, %c0_7] : memref<64x8xf32, #tpu.memory_space<vmem>>, vector<64x8xf32>
    %c0_8 = arith.constant 0 : index
    %c0_9 = arith.constant 0 : index
    %7 = vector.load %arg2[%c0_8, %c0_9] : memref<8x128xbf16, #tpu.memory_space<vmem>>, vector<8x128xbf16>
    %8 = arith.truncf %6 : vector<64x8xf32> to vector<64x8xbf16>
    %9 = arith.extf %8 : vector<64x8xbf16> to vector<64x8xf32>
    %10 = arith.subf %6, %9 : vector<64x8xf32>
    %11 = arith.truncf %10 : vector<64x8xf32> to vector<64x8xbf16>
    %cst = arith.constant dense<0.000000e+00> : vector<64x128xf32>
    %12 = tpu.matmul %8, %7, %cst {dimension_numbers = #tpu.dot_dimension_numbers<[1], [0], [0], [1], [0, 0, 1, 1], [], []>} : vector<64x8xbf16>, vector<8x128xbf16>, vector<64x128xf32> -> vector<64x128xf32>
    %cst_10 = arith.constant dense<0.000000e+00> : vector<64x128xf32>
    %13 = tpu.matmul %11, %7, %cst_10 {dimension_numbers = #tpu.dot_dimension_numbers<[1], [0], [0], [1], [0, 0, 1, 1], [], []>} : vector<64x8xbf16>, vector<8x128xbf16>, vector<64x128xf32> -> vector<64x128xf32>
    %14 = arith.addf %12, %13 : vector<64x128xf32>
    %15 = vector.broadcast %0 : vector<1x128xf32> to vector<64x128xf32>
    %16 = arith.mulf %14, %15 : vector<64x128xf32>
    %17 = vector.broadcast %1 : vector<1x128xf32> to vector<64x128xf32>
    %18 = arith.addf %16, %17 : vector<64x128xf32>
    %c0_11 = arith.constant 0 : index
    %c0_12 = arith.constant 0 : index
    %c0_13 = arith.constant 0 : index
    %19 = vector.load %arg4[%c0_11, %c0_12, %c0_13] : memref<2x128x128xf32, #tpu.memory_space<vmem>>, vector<1x128x128xf32>
    %20 = vector.shape_cast %19 : vector<1x128x128xf32> to vector<128x128xf32>
    %cst_14 = arith.constant 0.000000e+00 : f32
    %21 = vector.broadcast %cst_14 : f32 to vector<64x128xf32>
    %22 = arith.maximumf %18, %21 : vector<64x128xf32>
    %cst_15 = arith.constant dense<0.000000e+00> : vector<64x128xf32>
    %23 = tpu.matmul %22, %20, %cst_15 {dimension_numbers = #tpu.dot_dimension_numbers<[1], [0], [0], [1], [0, 0, 1, 1], [], []>} : vector<64x128xf32>, vector<128x128xf32>, vector<64x128xf32> -> vector<64x128xf32>
    %24 = vector.broadcast %2 : vector<1x128xf32> to vector<64x128xf32>
    %25 = arith.addf %23, %24 : vector<64x128xf32>
    %26 = arith.addf %18, %25 : vector<64x128xf32>
    %c1_16 = arith.constant 1 : index
    %c0_17 = arith.constant 0 : index
    %c0_18 = arith.constant 0 : index
    %27 = vector.load %arg4[%c1_16, %c0_17, %c0_18] : memref<2x128x128xf32, #tpu.memory_space<vmem>>, vector<1x128x128xf32>
    %28 = vector.shape_cast %27 : vector<1x128x128xf32> to vector<128x128xf32>
    %cst_19 = arith.constant 0.000000e+00 : f32
    %29 = vector.broadcast %cst_19 : f32 to vector<64x128xf32>
    %30 = arith.maximumf %26, %29 : vector<64x128xf32>
    %cst_20 = arith.constant dense<0.000000e+00> : vector<64x128xf32>
    %31 = tpu.matmul %30, %28, %cst_20 {dimension_numbers = #tpu.dot_dimension_numbers<[1], [0], [0], [1], [0, 0, 1, 1], [], []>} : vector<64x128xf32>, vector<128x128xf32>, vector<64x128xf32> -> vector<64x128xf32>
    %32 = vector.broadcast %3 : vector<1x128xf32> to vector<64x128xf32>
    %33 = arith.addf %31, %32 : vector<64x128xf32>
    %34 = arith.addf %26, %33 : vector<64x128xf32>
    %c0_21 = arith.constant 0 : index
    %c0_22 = arith.constant 0 : index
    %35 = vector.load %arg5[%c0_21, %c0_22] : memref<128x128xbf16, #tpu.memory_space<vmem>>, vector<128x128xbf16>
    %36 = arith.truncf %34 : vector<64x128xf32> to vector<64x128xbf16>
    %37 = arith.extf %36 : vector<64x128xbf16> to vector<64x128xf32>
    %38 = arith.subf %34, %37 : vector<64x128xf32>
    %39 = arith.truncf %38 : vector<64x128xf32> to vector<64x128xbf16>
    %cst_23 = arith.constant dense<0.000000e+00> : vector<64x128xf32>
    %40 = tpu.matmul %36, %35, %cst_23 {dimension_numbers = #tpu.dot_dimension_numbers<[1], [0], [0], [1], [0, 0, 1, 1], [], []>} : vector<64x128xbf16>, vector<128x128xbf16>, vector<64x128xf32> -> vector<64x128xf32>
    %cst_24 = arith.constant dense<0.000000e+00> : vector<64x128xf32>
    %41 = tpu.matmul %39, %35, %cst_24 {dimension_numbers = #tpu.dot_dimension_numbers<[1], [0], [0], [1], [0, 0, 1, 1], [], []>} : vector<64x128xbf16>, vector<128x128xbf16>, vector<64x128xf32> -> vector<64x128xf32>
    %42 = arith.addf %40, %41 : vector<64x128xf32>
    %cst_25 = arith.constant 3.125000e-02 : f32
    %43 = vector.broadcast %cst_25 : f32 to vector<64x128xf32>
    %44 = arith.mulf %42, %43 : vector<64x128xf32>
    %45 = arith.subf %34, %44 : vector<64x128xf32>
    %46 = arith.mulf %45, %45 : vector<64x128xf32>
    %47 = arith.truncf %46 : vector<64x128xf32> to vector<64x128xbf16>
    %48 = arith.extf %47 : vector<64x128xbf16> to vector<64x128xf32>
    %49 = arith.subf %46, %48 : vector<64x128xf32>
    %50 = arith.truncf %49 : vector<64x128xf32> to vector<64x128xbf16>
    %cst_26 = arith.constant dense<0.000000e+00> : vector<64x128xf32>
    %51 = tpu.matmul %47, %35, %cst_26 {dimension_numbers = #tpu.dot_dimension_numbers<[1], [0], [0], [1], [0, 0, 1, 1], [], []>} : vector<64x128xbf16>, vector<128x128xbf16>, vector<64x128xf32> -> vector<64x128xf32>
    %cst_27 = arith.constant dense<0.000000e+00> : vector<64x128xf32>
    %52 = tpu.matmul %50, %35, %cst_27 {dimension_numbers = #tpu.dot_dimension_numbers<[1], [0], [0], [1], [0, 0, 1, 1], [], []>} : vector<64x128xbf16>, vector<128x128xbf16>, vector<64x128xf32> -> vector<64x128xf32>
    %53 = arith.addf %51, %52 : vector<64x128xf32>
    %cst_28 = arith.constant 3.125000e-02 : f32
    %54 = vector.broadcast %cst_28 : f32 to vector<64x128xf32>
    %55 = arith.mulf %53, %54 : vector<64x128xf32>
    %cst_29 = arith.constant 9.99999974E-6 : f32
    %56 = vector.broadcast %cst_29 : f32 to vector<64x128xf32>
    %57 = arith.addf %55, %56 : vector<64x128xf32>
    %58 = math.rsqrt %57 : vector<64x128xf32>
    %59 = arith.mulf %45, %58 : vector<64x128xf32>
    %60 = vector.broadcast %4 : vector<1x128xf32> to vector<64x128xf32>
    %61 = arith.mulf %59, %60 : vector<64x128xf32>
    %62 = vector.broadcast %5 : vector<1x128xf32> to vector<64x128xf32>
    %63 = arith.addf %61, %62 : vector<64x128xf32>
    %cst_30 = arith.constant 0.000000e+00 : f32
    %64 = vector.broadcast %cst_30 : f32 to vector<64x128xf32>
    %65 = arith.maximumf %63, %64 : vector<64x128xf32>
    %c0_31 = arith.constant 0 : index
    %c0_32 = arith.constant 0 : index
    %66 = vector.load %arg6[%c0_31, %c0_32] : memref<128x64xf32, #tpu.memory_space<vmem>>, vector<128x64xf32>
    %cst_33 = arith.constant dense<0.000000e+00> : vector<64x64xf32>
    %67 = tpu.matmul %65, %66, %cst_33 {dimension_numbers = #tpu.dot_dimension_numbers<[1], [0], [0], [1], [0, 0, 1, 1], [], []>} : vector<64x128xf32>, vector<128x64xf32>, vector<64x64xf32> -> vector<64x64xf32>
    %c0_34 = arith.constant 0 : index
    %c0_35 = arith.constant 0 : index
    %68 = vector.load %arg7[%c0_34, %c0_35] : memref<1x64xf32, #tpu.memory_space<vmem>>, vector<1x64xf32>
    %69 = vector.broadcast %68 : vector<1x64xf32> to vector<64x64xf32>
    %70 = arith.addf %67, %69 : vector<64x64xf32>
    %c0_36 = arith.constant 0 : index
    %c0_37 = arith.constant 0 : index
    %71 = vector.load %arg8[%c0_36, %c0_37] : memref<64x64xf32, #tpu.memory_space<vmem>>, vector<64x64xf32>
    tpu.vector_store %arg8[%c0_36, %c0_37], %70 {strides = array<i32>} : memref<64x64xf32, #tpu.memory_space<vmem>>, vector<64x64xf32>,
    return
  }
  func.func @transform_0(%arg0: i32) -> (i32, i32) {
    %c0_i32 = arith.constant 0 : i32
    %c0_i32_0 = arith.constant 0 : i32
    return %arg0, %c0_i32 : i32, i32
  }
  func.func @transform_1(%arg0: i32) -> (i32, i32) {
    %c0_i32 = arith.constant 0 : i32
    %c0_i32_0 = arith.constant 0 : i32
    %c0_i32_1 = arith.constant 0 : i32
    return %c0_i32, %c0_i32_0 : i32, i32
  }
  func.func @transform_2(%arg0: i32) -> (i32, i32) {
    %c0_i32 = arith.constant 0 : i32
    %c0_i32_0 = arith.constant 0 : i32
    %c0_i32_1 = arith.constant 0 : i32
    return %c0_i32, %c0_i32_0 : i32, i32
  }
  func.func @transform_3(%arg0: i32) -> (i32, i32, i32) {
    %c0_i32 = arith.constant 0 : i32
    %c0_i32_0 = arith.constant 0 : i32
    %c0_i32_1 = arith.constant 0 : i32
    %c0_i32_2 = arith.constant 0 : i32
    return %c0_i32, %c0_i32_0, %c0_i32_1 : i32, i32, i32
  }
  func.func @transform_4(%arg0: i32) -> (i32, i32) {
    %c0_i32 = arith.constant 0 : i32
    %c0_i32_0 = arith.constant 0 : i32
    %c0_i32_1 = arith.constant 0 : i32
    return %c0_i32, %c0_i32_0 : i32, i32
  }
  func.func @transform_5(%arg0: i32) -> (i32, i32) {
    %c0_i32 = arith.constant 0 : i32
    %c0_i32_0 = arith.constant 0 : i32
    %c0_i32_1 = arith.constant 0 : i32
    return %c0_i32, %c0_i32_0 : i32, i32
  }
  func.func @transform_6(%arg0: i32) -> (i32, i32) {
    %c0_i32 = arith.constant 0 : i32
    %c0_i32_0 = arith.constant 0 : i32
    %c0_i32_1 = arith.constant 0 : i32
    return %c0_i32, %c0_i32_0 : i32, i32
  }
  func.func @transform_7(%arg0: i32) -> (i32, i32) {
    %c0_i32 = arith.constant 0 : i32
    %c0_i32_0 = arith.constant 0 : i32
    return %arg0, %c0_i32 : i32, i32
  }
}

</mosaic_0001>

<llo_original>
// kernel: tpu_custom_call.1
$region0: #{tpu_custom_call.1}
  #allocation0 [shape = 'u32[]', space=smem, size = 0x4, offset = 0x4, fixed_abs, tag = 'smem constant byte address 0x4 - core index']
  #allocation1 [shape = 'u32[72,128]{1,0:T(1,128)}', space=vmem, size = 0x9000, scoped, tag = 'internal scratch']
  %s0 = inlined_call_operand.vmem [shape: f32[64,8], index: 0, kind: input, shape index: {}]
  %s1 = inlined_call_operand.hbm [shape: bf16[8,128], index: 1, kind: input, shape index: {}]
  %s2 = inlined_call_operand.vmem [shape: f32[6,128], index: 2, kind: input, shape index: {}]
  %s3 = inlined_call_operand.vmem [shape: f32[2,128,128], index: 3, kind: input, shape index: {}]
  %s4 = inlined_call_operand.hbm [shape: bf16[128,128], index: 4, kind: input, shape index: {}]
  %s5 = inlined_call_operand.vmem [shape: f32[128,64], index: 5, kind: input, shape index: {}]
  %s6 = inlined_call_operand.vmem [shape: f32[1,64], index: 6, kind: input, shape index: {}]
  %s7 = inlined_call_operand.hbm [shape: f32[64,64], index: 7, kind: output, shape index: {}]
  %s8 = sld [smem:[#allocation0]]
  $region46: #{tpu_custom_call.1} parent=0
    _
  %s10 = ssub.s32 1, %s8
  %s11 = scalar_select 0, %s10, %s8
  $region1: #{tpu_custom_call.1} parent=0
    #allocation2 [shape = 'u8[2048]{0}', space=vmem, size = 0x800, scoped, tag = 'input window, operand 1, single buffered']
    #allocation3 [shape = 's32[1]{0}', space=sflag, size = 0x4, scoped, tag = 'scoped memory for tpu_custom_call.1']
    #allocation4 [shape = 's32[1]{0}', space=sflag, size = 0x4, scoped, tag = 'scoped memory for tpu_custom_call.1']
    #allocation5 [shape = 'u8[32768]{0}', space=vmem, size = 0x8000, scoped, tag = 'input window, operand 4, single buffered']
    #allocation6 [shape = 's32[1]{0}', space=sflag, size = 0x4, scoped, tag = 'scoped memory for tpu_custom_call.1']
    #allocation7 [shape = 'u8[32768]{0}', space=vmem, size = 0x8000, scoped, tag = 'output window, operand 0, single buffered']
    %12 = vsyncpa [#allocation3], 0
    %13 = vsyncpa [#allocation6], 0
    %14 = vsyncpa [#allocation4], 0
    // Predicated region
    $region2: #{tpu_custom_call.1} parent=1 // pred_check
      _
    $region3: #{tpu_custom_call.1} parent=1 // pred_check_branch
      %16 = sbr.rel (0) target = $region5
    $region4: #{tpu_custom_call.1} parent=1 // pred_region
      _
    $region5: #{tpu_custom_call.1} parent=1 // pred_fallthru
      _
    // Predicated region
    $region6: #{tpu_custom_call.1} parent=1 // pred_check
      _
    $region7: #{tpu_custom_call.1} parent=1 // pred_check_branch
      %18 = sbr.rel (0) target = $region9
    $region8: #{tpu_custom_call.1} parent=1 // pred_region
      %20 = vsyncadd [#allocation3], 0
      %s22 = sshll.u32 %s1, 4
      %s23 = int_to_ptr.hbm [resolvable:$true] %s22
      %s24 = sshll.u32 [#allocation2], 4
      %s25 = int_to_ptr.vmem [resolvable:$true] %s24
      %27 = dma.hbm_to_vmem [thread:$0]  %s23, 64, %s25, [#allocation3]
    $region9: #{tpu_custom_call.1} parent=1 // pred_fallthru
      _
    // Predicated region
    $region10: #{tpu_custom_call.1} parent=1 // pred_check
      _
    $region11: #{tpu_custom_call.1} parent=1 // pred_check_branch
      %29 = sbr.rel (0) target = $region13
    $region12: #{tpu_custom_call.1} parent=1 // pred_region
      _
    $region13: #{tpu_custom_call.1} parent=1 // pred_fallthru
      _
    // Predicated region
    $region14: #{tpu_custom_call.1} parent=1 // pred_check
      _
    $region15: #{tpu_custom_call.1} parent=1 // pred_check_branch
      %31 = sbr.rel (0) target = $region17
    $region16: #{tpu_custom_call.1} parent=1 // pred_region
      _
    $region17: #{tpu_custom_call.1} parent=1 // pred_fallthru
      _
    // Predicated region
    $region18: #{tpu_custom_call.1} parent=1 // pred_check
      _
    $region19: #{tpu_custom_call.1} parent=1 // pred_check_branch
      %33 = sbr.rel (0) target = $region21
    $region20: #{tpu_custom_call.1} parent=1 // pred_region
      %35 = vsyncadd [#allocation6], 0
      %s36 = sshll.u32 %s4, 4
      %s37 = int_to_ptr.hbm [resolvable:$true] %s36
      %s38 = sshll.u32 [#allocation5], 4
      %s39 = int_to_ptr.vmem [resolvable:$true] %s38
      %44 = dma.hbm_to_vmem [thread:$0]  %s37, 1024, %s39, [#allocation6], 64, 64, 4
    $region21: #{tpu_custom_call.1} parent=1 // pred_fallthru
      _
    // Predicated region
    $region22: #{tpu_custom_call.1} parent=1 // pred_check
      _
    $region23: #{tpu_custom_call.1} parent=1 // pred_check_branch
      %46 = sbr.rel (0) target = $region25
    $region24: #{tpu_custom_call.1} parent=1 // pred_region
      _
    $region25: #{tpu_custom_call.1} parent=1 // pred_fallthru
      _
    // Predicated region
    $region26: #{tpu_custom_call.1} parent=1 // pred_check
      _
    $region27: #{tpu_custom_call.1} parent=1 // pred_check_branch
      %48 = sbr.rel (0) target = $region29
    $region28: #{tpu_custom_call.1} parent=1 // pred_region
      _
    $region29: #{tpu_custom_call.1} parent=1 // pred_fallthru
      _
    // Predicated region
    $region30: #{tpu_custom_call.1} parent=1 // pred_check
      _
    $region31: #{tpu_custom_call.1} parent=1 // pred_check_branch
      %50 = sbr.rel (0) target = $region33
    $region32: #{tpu_custom_call.1} parent=1 // pred_region
      %52 = dma.done [#allocation3], 64
    $region33: #{tpu_custom_call.1} parent=1 // pred_fallthru
      _
    // Predicated region
    $region34: #{tpu_custom_call.1} parent=1 // pred_check
      _
    $region35: #{tpu_custom_call.1} parent=1 // pred_check_branch
      %54 = sbr.rel (0) target = $region37
    $region36: #{tpu_custom_call.1} parent=1 // pred_region
      %56 = dma.done [#allocation6], 1024
    $region37: #{tpu_custom_call.1} parent=1 // pred_fallthru
      _
    %v58 = vld [vmem:[%s2] sm:$0x1]
    %v59 = vld [vmem:[%s2 + $0x1] sm:$0x1]
    %v60 = vld [vmem:[%s2 + $0x2] sm:$0x1]
    %v61 = vld [vmem:[%s2 + $0x3] sm:$0x1]
    %v62 = vld [vmem:[%s2 + $0x4] sm:$0x1]
    %v63 = vld [vmem:[%s2 + $0x5] sm:$0x1]
    %v64 = vld [vmem:[%s0] sm:$0xff]
    %v65 = vld [vmem:[%s0 + $0x8] sm:$0xff]
    %v66 = vld [vmem:[%s0 + $0x10] sm:$0xff]
    %v67 = vld [vmem:[%s0 + $0x18] sm:$0xff]
    %v68 = vld [vmem:[%s0 + $0x20] sm:$0xff]
    %v69 = vld [vmem:[%s0 + $0x28] sm:$0xff]
    %v70 = vld [vmem:[%s0 + $0x30] sm:$0xff]
    %v71 = vld [vmem:[%s0 + $0x38] sm:$0xff]
    %v72 = vld [vmem:[#allocation2] sm:$0xf]
    %v73 = vpack.c.bf16 %v64, %v64
    %v74 = vpack.c.bf16 %v65, %v65
    %v75 = vpack.c.bf16 %v66, %v66
    %v76 = vpack.c.bf16 %v67, %v67
    %v77 = vpack.c.bf16 %v68, %v68
    %v78 = vpack.c.bf16 %v69, %v69
    %v79 = vpack.c.bf16 %v70, %v70
    %v80 = vpack.c.bf16 %v71, %v71
    %v81 = vunpack.c.l.bf16 %v73
    %v82 = vunpack.c.l.bf16 %v74
    %v83 = vunpack.c.l.bf16 %v75
    %v84 = vunpack.c.l.bf16 %v76
    %v85 = vunpack.c.l.bf16 %v77
    %v86 = vunpack.c.l.bf16 %v78
    %v87 = vunpack.c.l.bf16 %v79
    %v88 = vunpack.c.l.bf16 %v80
    %v89 = vsub.f32 %v64, %v81
    %v90 = vsub.f32 %v65, %v82
    %v91 = vsub.f32 %v66, %v83
    %v92 = vsub.f32 %v67, %v84
    %v93 = vsub.f32 %v68, %v85
    %v94 = vsub.f32 %v69, %v86
    %v95 = vsub.f32 %v70, %v87
    %v96 = vsub.f32 %v71, %v88
    %v97 = vpack.c.bf16 %v90, %v89
    %v98 = vpack.c.bf16 %v92, %v91
    %v99 = vpack.c.bf16 %v94, %v93
    %v100 = vpack.c.bf16 %v96, %v95
    %vm101 = vcmask 64512
    %v103 = vsel %vm101, %v97, 0
    %v106 = vsel %vm101, %v98, 0
    %v109 = vsel %vm101, %v99, 0
    %v112 = vsel %vm101, %v100, 0
    %vm114 = vcmask 1043456
    %v116 = vsel %vm114, %v72, 0
    %118 = vmatpush.bf16.msra.mxu0 0
    %119 = vmatpush.bf16.msra.mxu0 0
    %120 = vmatpush.bf16.msra.mxu0 0
    %121 = vmatpush.bf16.msra.mxu0 0
    %122 = vmatpush.bf16.msra.mxu0 0
    %123 = vmatpush.bf16.msra.mxu0 0
    %124 = vmatpush.bf16.msra.mxu0 0
    %125 = vmatpush.bf16.msra.mxu0 %v116
    %126 = vmatmul.bf16.gmra.mxu0 %v103
    %v127 = vpop.f32.mrf.mxu0
    %v128 = vadd.f32 0.0, %v127
    %v129 = vpop.f32.mrf.mxu0
    %v130 = vadd.f32 0.0, %v129
    %131 = vmatmul.bf16.gmra.mxu0 %v106
    %v132 = vpop.f32.mrf.mxu0
    %v133 = vadd.f32 0.0, %v132
    %v134 = vpop.f32.mrf.mxu0
    %v135 = vadd.f32 0.0, %v134
    %136 = vmatmul.bf16.gmra.mxu0 %v109
    %v137 = vpop.f32.mrf.mxu0
    %v138 = vadd.f32 0.0, %v137
    %v139 = vpop.f32.mrf.mxu0
    %v140 = vadd.f32 0.0, %v139
    %141 = vmatmul.bf16.gmra.mxu0 %v112
    %v142 = vpop.f32.mrf.mxu0
    %v143 = vadd.f32 0.0, %v142
    %v144 = vpop.f32.mrf.mxu0
    %v145 = vadd.f32 0.0, %v144
    %146 = vdwg.mxu0
    %v155 = vunpack.c.l.b16 %v73
    %v156 = vunpack.c.l.b16 %v74
    %v157 = vunpack.c.l.b16 %v75
    %v158 = vunpack.c.l.b16 %v76
    %v159 = vunpack.c.l.b16 %v77
    %v160 = vunpack.c.l.b16 %v78
    %v161 = vunpack.c.l.b16 %v79
    %v162 = vunpack.c.l.b16 %v80
    %v163 = vpack.c.b16 %v156, %v155
    %v164 = vpack.c.b16 %v158, %v157
    %v165 = vpack.c.b16 %v160, %v159
    %v166 = vpack.c.b16 %v162, %v161
    %v168 = vsel %vm101, %v163, 0
    %v171 = vsel %vm101, %v164, 0
    %v174 = vsel %vm101, %v165, 0
    %v177 = vsel %vm101, %v166, 0
    %179 = vmatpush.bf16.msra.mxu0 0
    %180 = vmatpush.bf16.msra.mxu0 0
    %181 = vmatpush.bf16.msra.mxu0 0
    %182 = vmatpush.bf16.msra.mxu0 0
    %183 = vmatpush.bf16.msra.mxu0 0
    %184 = vmatpush.bf16.msra.mxu0 0
    %185 = vmatpush.bf16.msra.mxu0 0
    %186 = vmatpush.bf16.msra.mxu0 %v116
    %187 = vmatmul.bf16.gmra.mxu0 %v168
    %v188 = vpop.f32.mrf.mxu0
    %v189 = vadd.f32 %v128, %v188
    %v190 = vpop.f32.mrf.mxu0
    %v191 = vadd.f32 %v130, %v190
    %192 = vmatmul.bf16.gmra.mxu0 %v171
    %v193 = vpop.f32.mrf.mxu0
    %v194 = vadd.f32 %v133, %v193
    %v195 = vpop.f32.mrf.mxu0
    %v196 = vadd.f32 %v135, %v195
    %197 = vmatmul.bf16.gmra.mxu0 %v174
    %v198 = vpop.f32.mrf.mxu0
    %v199 = vadd.f32 %v138, %v198
    %v200 = vpop.f32.mrf.mxu0
    %v201 = vadd.f32 %v140, %v200
    %202 = vmatmul.bf16.gmra.mxu0 %v177
    %v203 = vpop.f32.mrf.mxu0
    %v204 = vadd.f32 %v143, %v203
    %v205 = vpop.f32.mrf.mxu0
    %v206 = vadd.f32 %v145, %v205
    %207 = vdwg.mxu0
    %v208 = vperm.slane %v58, 0
    %v209 = vmul.f32 %v189, %v208
    %v210 = vmul.f32 %v191, %v208
    %v211 = vmul.f32 %v194, %v208
    %v212 = vmul.f32 %v196, %v208
    %v213 = vmul.f32 %v199, %v208
    %v214 = vmul.f32 %v201, %v208
    %v215 = vmul.f32 %v204, %v208
    %v216 = vmul.f32 %v206, %v208
    %v217 = vperm.slane %v59, 0
    %v218 = vadd.f32 %v209, %v217
    %v219 = vadd.f32 %v210, %v217
    %v220 = vadd.f32 %v211, %v217
    %v221 = vadd.f32 %v212, %v217
    %v222 = vadd.f32 %v213, %v217
    %v223 = vadd.f32 %v214, %v217
    %v224 = vadd.f32 %v215, %v217
    %v225 = vadd.f32 %v216, %v217
    %v226 = vld [vmem:[%s3] sm:$0xff]
    %v227 = vld [vmem:[%s3 + $0x8] sm:$0xff]
    %v228 = vld [vmem:[%s3 + $0x10] sm:$0xff]
    %v229 = vld [vmem:[%s3 + $0x18] sm:$0xff]
    %v230 = vld [vmem:[%s3 + $0x20] sm:$0xff]
    %v231 = vld [vmem:[%s3 + $0x28] sm:$0xff]
    %v232 = vld [vmem:[%s3 + $0x30] sm:$0xff]
    %v233 = vld [vmem:[%s3 + $0x38] sm:$0xff]
    %v234 = vld [vmem:[%s3 + $0x40] sm:$0xff]
    %v235 = vld [vmem:[%s3 + $0x48] sm:$0xff]
    %v236 = vld [vmem:[%s3 + $0x50] sm:$0xff]
    %v237 = vld [vmem:[%s3 + $0x58] sm:$0xff]
    %v238 = vld [vmem:[%s3 + $0x60] sm:$0xff]
    %v239 = vld [vmem:[%s3 + $0x68] sm:$0xff]
    %v240 = vld [vmem:[%s3 + $0x70] sm:$0xff]
    %v241 = vld [vmem:[%s3 + $0x78] sm:$0xff]
    %v242 = vmax.f32 %v218, 0.0
    %v243 = vmax.f32 %v219, 0.0
    %v244 = vmax.f32 %v220, 0.0
    %v245 = vmax.f32 %v221, 0.0
    %v246 = vmax.f32 %v222, 0.0
    %v247 = vmax.f32 %v223, 0.0
    %v248 = vmax.f32 %v224, 0.0
    %v249 = vmax.f32 %v225, 0.0
    %v250 = vperm.slane %v60, 0
    %251 = vmatpush.msra.mxu0 %v241
    %252 = vmatpush.msra.mxu0 %v240
    %253 = vmatpush.msra.mxu0 %v239
    %254 = vmatpush.msra.mxu0 %v238
    %255 = vmatpush.msra.mxu0 %v237
    %256 = vmatpush.msra.mxu0 %v236
    %257 = vmatpush.msra.mxu0 %v235
    %258 = vmatpush.msra.mxu0 %v234
    %259 = vmatpush.msra.mxu0 %v233
    %260 = vmatpush.msra.mxu0 %v232
    %261 = vmatpush.msra.mxu0 %v231
    %262 = vmatpush.msra.mxu0 %v230
    %263 = vmatpush.msra.mxu0 %v229
    %264 = vmatpush.msra.mxu0 %v228
    %265 = vmatpush.msra.mxu0 %v227
    %266 = vmatpush.msra.mxu0 %v226
    %267 = vmatmul.f32.gmra.mxu0 %v242
    %v268 = vpop.f32.mrf.mxu0
    %v269 = vadd.f32 %v250, %v268
    %270 = vmatmul.f32.gmra.mxu0 %v243
    %v271 = vpop.f32.mrf.mxu0
    %v272 = vadd.f32 %v250, %v271
    %273 = vmatmul.f32.gmra.mxu0 %v244
    %v274 = vpop.f32.mrf.mxu0
    %v275 = vadd.f32 %v250, %v274
    %276 = vmatmul.f32.gmra.mxu0 %v245
    %v277 = vpop.f32.mrf.mxu0
    %v278 = vadd.f32 %v250, %v277
    %279 = vmatmul.f32.gmra.mxu0 %v246
    %v280 = vpop.f32.mrf.mxu0
    %v281 = vadd.f32 %v250, %v280
    %282 = vmatmul.f32.gmra.mxu0 %v247
    %v283 = vpop.f32.mrf.mxu0
    %v284 = vadd.f32 %v250, %v283
    %285 = vmatmul.f32.gmra.mxu0 %v248
    %v286 = vpop.f32.mrf.mxu0
    %v287 = vadd.f32 %v250, %v286
    %288 = vmatmul.f32.gmra.mxu0 %v249
    %v289 = vpop.f32.mrf.mxu0
    %v290 = vadd.f32 %v250, %v289
    %291 = vdwg.mxu0
    %v292 = vadd.f32 %v218, %v269
    %v293 = vadd.f32 %v219, %v272
    %v294 = vadd.f32 %v220, %v275
    %v295 = vadd.f32 %v221, %v278
    %v296 = vadd.f32 %v222, %v281
    %v297 = vadd.f32 %v223, %v284
    %v298 = vadd.f32 %v224, %v287
    %v299 = vadd.f32 %v225, %v290
    %s300 = scalar_lea.vmem %s3, 128
    %v301 = vld [vmem:[%s300] sm:$0xff]
    %v302 = vld [vmem:[%s300 + $0x8] sm:$0xff]
    %v303 = vld [vmem:[%s300 + $0x10] sm:$0xff]
    %v304 = vld [vmem:[%s300 + $0x18] sm:$0xff]
    %v305 = vld [vmem:[%s300 + $0x20] sm:$0xff]
    %v306 = vld [vmem:[%s300 + $0x28] sm:$0xff]
    %v307 = vld [vmem:[%s300 + $0x30] sm:$0xff]
    %v308 = vld [vmem:[%s300 + $0x38] sm:$0xff]
    %v309 = vld [vmem:[%s300 + $0x40] sm:$0xff]
    %v310 = vld [vmem:[%s300 + $0x48] sm:$0xff]
    %v311 = vld [vmem:[%s300 + $0x50] sm:$0xff]
    %v312 = vld [vmem:[%s300 + $0x58] sm:$0xff]
    %v313 = vld [vmem:[%s300 + $0x60] sm:$0xff]
    %v314 = vld [vmem:[%s300 + $0x68] sm:$0xff]
    %v315 = vld [vmem:[%s300 + $0x70] sm:$0xff]
    %v316 = vld [vmem:[%s300 + $0x78] sm:$0xff]
    %v317 = vmax.f32 %v292, 0.0
    %v318 = vmax.f32 %v293, 0.0
    %v319 = vmax.f32 %v294, 0.0
    %v320 = vmax.f32 %v295, 0.0
    %v321 = vmax.f32 %v296, 0.0
    %v322 = vmax.f32 %v297, 0.0
    %v323 = vmax.f32 %v298, 0.0
    %v324 = vmax.f32 %v299, 0.0
    %v325 = vperm.slane %v61, 0
    %326 = vmatpush.msra.mxu0 %v316
    %327 = vmatpush.msra.mxu0 %v315
    %328 = vmatpush.msra.mxu0 %v314
    %329 = vmatpush.msra.mxu0 %v313
    %330 = vmatpush.msra.mxu0 %v312
    %331 = vmatpush.msra.mxu0 %v311
    %332 = vmatpush.msra.mxu0 %v310
    %333 = vmatpush.msra.mxu0 %v309
    %334 = vmatpush.msra.mxu0 %v308
    %335 = vmatpush.msra.mxu0 %v307
    %336 = vmatpush.msra.mxu0 %v306
    %337 = vmatpush.msra.mxu0 %v305
    %338 = vmatpush.msra.mxu0 %v304
    %339 = vmatpush.msra.mxu0 %v303
    %340 = vmatpush.msra.mxu0 %v302
    %341 = vmatpush.msra.mxu0 %v301
    %342 = vmatmul.f32.gmra.mxu0 %v317
    %v343 = vpop.f32.mrf.mxu0
    %v344 = vadd.f32 %v325, %v343
    %345 = vmatmul.f32.gmra.mxu0 %v318
    %v346 = vpop.f32.mrf.mxu0
    %v347 = vadd.f32 %v325, %v346
    %348 = vmatmul.f32.gmra.mxu0 %v319
    %v349 = vpop.f32.mrf.mxu0
    %v350 = vadd.f32 %v325, %v349
    %351 = vmatmul.f32.gmra.mxu0 %v320
    %v352 = vpop.f32.mrf.mxu0
    %v353 = vadd.f32 %v325, %v352
    %354 = vmatmul.f32.gmra.mxu0 %v321
    %v355 = vpop.f32.mrf.mxu0
    %v356 = vadd.f32 %v325, %v355
    %357 = vmatmul.f32.gmra.mxu0 %v322
    %v358 = vpop.f32.mrf.mxu0
    %v359 = vadd.f32 %v325, %v358
    %360 = vmatmul.f32.gmra.mxu0 %v323
    %v361 = vpop.f32.mrf.mxu0
    %v362 = vadd.f32 %v325, %v361
    %363 = vmatmul.f32.gmra.mxu0 %v324
    %v364 = vpop.f32.mrf.mxu0
    %v365 = vadd.f32 %v325, %v364
    %366 = vdwg.mxu0
    %v367 = vadd.f32 %v292, %v344
    %v368 = vadd.f32 %v293, %v347
    %v369 = vadd.f32 %v294, %v350
    %v370 = vadd.f32 %v295, %v353
    %v371 = vadd.f32 %v296, %v356
    %v372 = vadd.f32 %v297, %v359
    %v373 = vadd.f32 %v298, %v362
    %v374 = vadd.f32 %v299, %v365
    %v375 = vld [vmem:[#allocation5] sm:$0xf]
    %v376 = vld [vmem:[#allocation5 + $0x4] sm:$0xf]
    %v377 = vld [vmem:[#allocation5 + $0x8] sm:$0xf]
    %v378 = vld [vmem:[#allocation5 + $0xc] sm:$0xf]
    %v379 = vld [vmem:[#allocation5 + $0x10] sm:$0xf]
    %v380 = vld [vmem:[#allocation5 + $0x14] sm:$0xf]
    %v381 = vld [vmem:[#allocation5 + $0x18] sm:$0xf]
    %v382 = vld [vmem:[#allocation5 + $0x1c] sm:$0xf]
    %v383 = vld [vmem:[#allocation5 + $0x20] sm:$0xf]
    %v384 = vld [vmem:[#allocation5 + $0x24] sm:$0xf]
    %v385 = vld [vmem:[#allocation5 + $0x28] sm:$0xf]
    %v386 = vld [vmem:[#allocation5 + $0x2c] sm:$0xf]
    %v387 = vld [vmem:[#allocation5 + $0x30] sm:$0xf]
    %v388 = vld [vmem:[#allocation5 + $0x34] sm:$0xf]
    %v389 = vld [vmem:[#allocation5 + $0x38] sm:$0xf]
    %v390 = vld [vmem:[#allocation5 + $0x3c] sm:$0xf]
    %v391 = vpack.c.bf16 %v367, %v367
    %v392 = vpack.c.bf16 %v368, %v368
    %v393 = vpack.c.bf16 %v369, %v369
    %v394 = vpack.c.bf16 %v370, %v370
    %v395 = vpack.c.bf16 %v371, %v371
    %v396 = vpack.c.bf16 %v372, %v372
    %v397 = vpack.c.bf16 %v373, %v373
    %v398 = vpack.c.bf16 %v374, %v374
    %v399 = vunpack.c.l.bf16 %v391
    %v400 = vunpack.c.l.bf16 %v392
    %v401 = vunpack.c.l.bf16 %v393
    %v402 = vunpack.c.l.bf16 %v394
    %v403 = vunpack.c.l.bf16 %v395
    %v404 = vunpack.c.l.bf16 %v396
    %v405 = vunpack.c.l.bf16 %v397
    %v406 = vunpack.c.l.bf16 %v398
    %v407 = vsub.f32 %v367, %v399
    %v408 = vsub.f32 %v368, %v400
    %v409 = vsub.f32 %v369, %v401
    %v410 = vsub.f32 %v370, %v402
    %v411 = vsub.f32 %v371, %v403
    %v412 = vsub.f32 %v372, %v404
    %v413 = vsub.f32 %v373, %v405
    %v414 = vsub.f32 %v374, %v406
    %v415 = vpack.c.bf16 %v408, %v407
    %v416 = vpack.c.bf16 %v410, %v409
    %v417 = vpack.c.bf16 %v412, %v411
    %v418 = vpack.c.bf16 %v414, %v413
    %v435 = vunpack.c.l.b16 %v375
    %v436 = vunpack.c.l.b16 %v376
    %v437 = vunpack.c.l.b16 %v377
    %v438 = vunpack.c.l.b16 %v378
    %v439 = vunpack.c.l.b16 %v379
    %v440 = vunpack.c.l.b16 %v380
    %v441 = vunpack.c.l.b16 %v381
    %v442 = vunpack.c.l.b16 %v382
    %v443 = vunpack.c.l.b16 %v383
    %v444 = vunpack.c.l.b16 %v384
    %v445 = vunpack.c.l.b16 %v385
    %v446 = vunpack.c.l.b16 %v386
    %v447 = vunpack.c.l.b16 %v387
    %v448 = vunpack.c.l.b16 %v388
    %v449 = vunpack.c.l.b16 %v389
    %v450 = vunpack.c.l.b16 %v390
    %v451 = vpack.c.b16 %v436, %v435
    %v452 = vpack.c.b16 %v438, %v437
    %v453 = vpack.c.b16 %v440, %v439
    %v454 = vpack.c.b16 %v442, %v441
    %v455 = vpack.c.b16 %v444, %v443
    %v456 = vpack.c.b16 %v446, %v445
    %v457 = vpack.c.b16 %v448, %v447
    %v458 = vpack.c.b16 %v450, %v449
    %467 = vmatpush.bf16.msra.mxu0 %v458
    %468 = vmatpush.bf16.msra.mxu0 %v457
    %469 = vmatpush.bf16.msra.mxu0 %v456
    %470 = vmatpush.bf16.msra.mxu0 %v455
    %471 = vmatpush.bf16.msra.mxu0 %v454
    %472 = vmatpush.bf16.msra.mxu0 %v453
    %473 = vmatpush.bf16.msra.mxu0 %v452
    %474 = vmatpush.bf16.msra.mxu0 %v451
    %475 = vmatmul.bf16.gmra.mxu0 %v415
    %v476 = vpop.f32.mrf.mxu0
    %v477 = vadd.f32 0.0, %v476
    %v478 = vpop.f32.mrf.mxu0
    %v479 = vadd.f32 0.0, %v478
    %480 = vmatmul.bf16.gmra.mxu0 %v416
    %v481 = vpop.f32.mrf.mxu0
    %v482 = vadd.f32 0.0, %v481
    %v483 = vpop.f32.mrf.mxu0
    %v484 = vadd.f32 0.0, %v483
    %485 = vmatmul.bf16.gmra.mxu0 %v417
    %v486 = vpop.f32.mrf.mxu0
    %v487 = vadd.f32 0.0, %v486
    %v488 = vpop.f32.mrf.mxu0
    %v489 = vadd.f32 0.0, %v488
    %490 = vmatmul.bf16.gmra.mxu0 %v418
    %v491 = vpop.f32.mrf.mxu0
    %v492 = vadd.f32 0.0, %v491
    %v493 = vpop.f32.mrf.mxu0
    %v494 = vadd.f32 0.0, %v493
    %495 = vdwg.mxu0
    %v504 = vunpack.c.l.b16 %v391
    %v505 = vunpack.c.l.b16 %v392
    %v506 = vunpack.c.l.b16 %v393
    %v507 = vunpack.c.l.b16 %v394
    %v508 = vunpack.c.l.b16 %v395
    %v509 = vunpack.c.l.b16 %v396
    %v510 = vunpack.c.l.b16 %v397
    %v511 = vunpack.c.l.b16 %v398
    %v512 = vpack.c.b16 %v505, %v504
    %v513 = vpack.c.b16 %v507, %v506
    %v514 = vpack.c.b16 %v509, %v508
    %v515 = vpack.c.b16 %v511, %v510
    %520 = vmatpush.bf16.msra.mxu0 %v458
    %521 = vmatpush.bf16.msra.mxu0 %v457
    %522 = vmatpush.bf16.msra.mxu0 %v456
    %523 = vmatpush.bf16.msra.mxu0 %v455
    %524 = vmatpush.bf16.msra.mxu0 %v454
    %525 = vmatpush.bf16.msra.mxu0 %v453
    %526 = vmatpush.bf16.msra.mxu0 %v452
    %527 = vmatpush.bf16.msra.mxu0 %v451
    %528 = vmatmul.bf16.gmra.mxu0 %v512
    %v529 = vpop.f32.mrf.mxu0
    %v530 = vadd.f32 %v477, %v529
    %v531 = vpop.f32.mrf.mxu0
    %v532 = vadd.f32 %v479, %v531
    %533 = vmatmul.bf16.gmra.mxu0 %v513
    %v534 = vpop.f32.mrf.mxu0
    %v535 = vadd.f32 %v482, %v534
    %v536 = vpop.f32.mrf.mxu0
    %v537 = vadd.f32 %v484, %v536
    %538 = vmatmul.bf16.gmra.mxu0 %v514
    %v539 = vpop.f32.mrf.mxu0
    %v540 = vadd.f32 %v487, %v539
    %v541 = vpop.f32.mrf.mxu0
    %v542 = vadd.f32 %v489, %v541
    %543 = vmatmul.bf16.gmra.mxu0 %v515
    %v544 = vpop.f32.mrf.mxu0
    %v545 = vadd.f32 %v492, %v544
    %v546 = vpop.f32.mrf.mxu0
    %v547 = vadd.f32 %v494, %v546
    %548 = vdwg.mxu0
    %v549 = vmul.f32 %v530, 0.03125
    %v550 = vmul.f32 %v532, 0.03125
    %v551 = vmul.f32 %v535, 0.03125
    %v552 = vmul.f32 %v537, 0.03125
    %v553 = vmul.f32 %v540, 0.03125
    %v554 = vmul.f32 %v542, 0.03125
    %v555 = vmul.f32 %v545, 0.03125
    %v556 = vmul.f32 %v547, 0.03125
    %v557 = vsub.f32 %v367, %v549
    %v558 = vsub.f32 %v368, %v550
    %v559 = vsub.f32 %v369, %v551
    %v560 = vsub.f32 %v370, %v552
    %v561 = vsub.f32 %v371, %v553
    %v562 = vsub.f32 %v372, %v554
    %v563 = vsub.f32 %v373, %v555
    %v564 = vsub.f32 %v374, %v556
    %v565 = vmul.f32 %v557, %v557
    %v566 = vmul.f32 %v558, %v558
    %v567 = vmul.f32 %v559, %v559
    %v568 = vmul.f32 %v560, %v560
    %v569 = vmul.f32 %v561, %v561
    %v570 = vmul.f32 %v562, %v562
    %v571 = vmul.f32 %v563, %v563
    %v572 = vmul.f32 %v564, %v564
    %v573 = vpack.c.bf16 %v565, %v565
    %v574 = vpack.c.bf16 %v566, %v566
    %v575 = vpack.c.bf16 %v567, %v567
    %v576 = vpack.c.bf16 %v568, %v568
    %v577 = vpack.c.bf16 %v569, %v569
    %v578 = vpack.c.bf16 %v570, %v570
    %v579 = vpack.c.bf16 %v571, %v571
    %v580 = vpack.c.bf16 %v572, %v572
    %v581 = vunpack.c.l.bf16 %v573
    %v582 = vunpack.c.l.bf16 %v574
    %v583 = vunpack.c.l.bf16 %v575
    %v584 = vunpack.c.l.bf16 %v576
    %v585 = vunpack.c.l.bf16 %v577
    %v586 = vunpack.c.l.bf16 %v578
    %v587 = vunpack.c.l.bf16 %v579
    %v588 = vunpack.c.l.bf16 %v580
    %v589 = vsub.f32 %v565, %v581
    %v590 = vsub.f32 %v566, %v582
    %v591 = vsub.f32 %v567, %v583
    %v592 = vsub.f32 %v568, %v584
    %v593 = vsub.f32 %v569, %v585
    %v594 = vsub.f32 %v570, %v586
    %v595 = vsub.f32 %v571, %v587
    %v596 = vsub.f32 %v572, %v588
    %v597 = vpack.c.bf16 %v590, %v589
    %v598 = vpack.c.bf16 %v592, %v591
    %v599 = vpack.c.bf16 %v594, %v593
    %v600 = vpack.c.bf16 %v596, %v595
    %601 = vmatpush.bf16.msra.mxu0 %v458
    %602 = vmatpush.bf16.msra.mxu0 %v457
    %603 = vmatpush.bf16.msra.mxu0 %v456
    %604 = vmatpush.bf16.msra.mxu0 %v455
    %605 = vmatpush.bf16.msra.mxu0 %v454
    %606 = vmatpush.bf16.msra.mxu0 %v453
    %607 = vmatpush.bf16.msra.mxu0 %v452
    %608 = vmatpush.bf16.msra.mxu0 %v451
    %609 = vmatmul.bf16.gmra.mxu0 %v597
    %v610 = vpop.f32.mrf.mxu0
    %v611 = vadd.f32 0.0, %v610
    %v612 = vpop.f32.mrf.mxu0
    %v613 = vadd.f32 0.0, %v612
    %614 = vmatmul.bf16.gmra.mxu0 %v598
    %v615 = vpop.f32.mrf.mxu0
    %v616 = vadd.f32 0.0, %v615
    %v617 = vpop.f32.mrf.mxu0
    %v618 = vadd.f32 0.0, %v617
    %619 = vmatmul.bf16.gmra.mxu0 %v599
    %v620 = vpop.f32.mrf.mxu0
    %v621 = vadd.f32 0.0, %v620
    %v622 = vpop.f32.mrf.mxu0
    %v623 = vadd.f32 0.0, %v622
    %624 = vmatmul.bf16.gmra.mxu0 %v600
    %v625 = vpop.f32.mrf.mxu0
    %v626 = vadd.f32 0.0, %v625
    %v627 = vpop.f32.mrf.mxu0
    %v628 = vadd.f32 0.0, %v627
    %629 = vdwg.mxu0
    %v638 = vunpack.c.l.b16 %v573
    %v639 = vunpack.c.l.b16 %v574
    %v640 = vunpack.c.l.b16 %v575
    %v641 = vunpack.c.l.b16 %v576
    %v642 = vunpack.c.l.b16 %v577
    %v643 = vunpack.c.l.b16 %v578
    %v644 = vunpack.c.l.b16 %v579
    %v645 = vunpack.c.l.b16 %v580
    %v646 = vpack.c.b16 %v639, %v638
    %v647 = vpack.c.b16 %v641, %v640
    %v648 = vpack.c.b16 %v643, %v642
    %v649 = vpack.c.b16 %v645, %v644
    %654 = vmatpush.bf16.msra.mxu0 %v458
    %655 = vmatpush.bf16.msra.mxu0 %v457
    %656 = vmatpush.bf16.msra.mxu0 %v456
    %657 = vmatpush.bf16.msra.mxu0 %v455
    %658 = vmatpush.bf16.msra.mxu0 %v454
    %659 = vmatpush.bf16.msra.mxu0 %v453
    %660 = vmatpush.bf16.msra.mxu0 %v452
    %661 = vmatpush.bf16.msra.mxu0 %v451
    %662 = vmatmul.bf16.gmra.mxu0 %v646
    %v663 = vpop.f32.mrf.mxu0
    %v664 = vadd.f32 %v611, %v663
    %v665 = vpop.f32.mrf.mxu0
    %v666 = vadd.f32 %v613, %v665
    %667 = vmatmul.bf16.gmra.mxu0 %v647
    %v668 = vpop.f32.mrf.mxu0
    %v669 = vadd.f32 %v616, %v668
    %v670 = vpop.f32.mrf.mxu0
    %v671 = vadd.f32 %v618, %v670
    %672 = vmatmul.bf16.gmra.mxu0 %v648
    %v673 = vpop.f32.mrf.mxu0
    %v674 = vadd.f32 %v621, %v673
    %v675 = vpop.f32.mrf.mxu0
    %v676 = vadd.f32 %v623, %v675
    %677 = vmatmul.bf16.gmra.mxu0 %v649
    %v678 = vpop.f32.mrf.mxu0
    %v679 = vadd.f32 %v626, %v678
    %v680 = vpop.f32.mrf.mxu0
    %v681 = vadd.f32 %v628, %v680
    %682 = vdwg.mxu0
    %v683 = vmul.f32 %v664, 0.03125
    %v684 = vmul.f32 %v666, 0.03125
    %v685 = vmul.f32 %v669, 0.03125
    %v686 = vmul.f32 %v671, 0.03125
    %v687 = vmul.f32 %v674, 0.03125
    %v688 = vmul.f32 %v676, 0.03125
    %v689 = vmul.f32 %v679, 0.03125
    %v690 = vmul.f32 %v681, 0.03125
    %v691 = vadd.f32 %v683, 1e-05
    %v692 = vadd.f32 %v684, 1e-05
    %v693 = vadd.f32 %v685, 1e-05
    %v694 = vadd.f32 %v686, 1e-05
    %v695 = vadd.f32 %v687, 1e-05
    %v696 = vadd.f32 %v688, 1e-05
    %v697 = vadd.f32 %v689, 1e-05
    %v698 = vadd.f32 %v690, 1e-05
    %v699 = vrsqrt.pop %v691
    %v700 = vmul.f32 %v699, %v691
    %v701 = vmul.f32 %v700, %v699
    %v702 = vmul.f32 0.5, %v701
    %v703 = vsub.f32 1.5, %v702
    %v704 = vmul.f32 %v699, %v703
    %vm705 = vweird.f32 %v691
    %vm706 = vweird.f32 %v699
    %vm707 = vmor %vm705, %vm706
    %v708 = vsel %vm707, %v699, %v704
    %v709 = vrsqrt.pop %v692
    %v710 = vmul.f32 %v709, %v692
    %v711 = vmul.f32 %v710, %v709
    %v712 = vmul.f32 0.5, %v711
    %v713 = vsub.f32 1.5, %v712
    %v714 = vmul.f32 %v709, %v713
    %vm715 = vweird.f32 %v692
    %vm716 = vweird.f32 %v709
    %vm717 = vmor %vm715, %vm716
    %v718 = vsel %vm717, %v709, %v714
    %v719 = vrsqrt.pop %v693
    %v720 = vmul.f32 %v719, %v693
    %v721 = vmul.f32 %v720, %v719
    %v722 = vmul.f32 0.5, %v721
    %v723 = vsub.f32 1.5, %v722
    %v724 = vmul.f32 %v719, %v723
    %vm725 = vweird.f32 %v693
    %vm726 = vweird.f32 %v719
    %vm727 = vmor %vm725, %vm726
    %v728 = vsel %vm727, %v719, %v724
    %v729 = vrsqrt.pop %v694
    %v730 = vmul.f32 %v729, %v694
    %v731 = vmul.f32 %v730, %v729
    %v732 = vmul.f32 0.5, %v731
    %v733 = vsub.f32 1.5, %v732
    %v734 = vmul.f32 %v729, %v733
    %vm735 = vweird.f32 %v694
    %vm736 = vweird.f32 %v729
    %vm737 = vmor %vm735, %vm736
    %v738 = vsel %vm737, %v729, %v734
    %v739 = vrsqrt.pop %v695
    %v740 = vmul.f32 %v739, %v695
    %v741 = vmul.f32 %v740, %v739
    %v742 = vmul.f32 0.5, %v741
    %v743 = vsub.f32 1.5, %v742
    %v744 = vmul.f32 %v739, %v743
    %vm745 = vweird.f32 %v695
    %vm746 = vweird.f32 %v739
    %vm747 = vmor %vm745, %vm746
    %v748 = vsel %vm747, %v739, %v744
    %v749 = vrsqrt.pop %v696
    %v750 = vmul.f32 %v749, %v696
    %v751 = vmul.f32 %v750, %v749
    %v752 = vmul.f32 0.5, %v751
    %v753 = vsub.f32 1.5, %v752
    %v754 = vmul.f32 %v749, %v753
    %vm755 = vweird.f32 %v696
    %vm756 = vweird.f32 %v749
    %vm757 = vmor %vm755, %vm756
    %v758 = vsel %vm757, %v749, %v754
    %v759 = vrsqrt.pop %v697
    %v760 = vmul.f32 %v759, %v697
    %v761 = vmul.f32 %v760, %v759
    %v762 = vmul.f32 0.5, %v761
    %v763 = vsub.f32 1.5, %v762
    %v764 = vmul.f32 %v759, %v763
    %vm765 = vweird.f32 %v697
    %vm766 = vweird.f32 %v759
    %vm767 = vmor %vm765, %vm766
    %v768 = vsel %vm767, %v759, %v764
    %v769 = vrsqrt.pop %v698
    %v770 = vmul.f32 %v769, %v698
    %v771 = vmul.f32 %v770, %v769
    %v772 = vmul.f32 0.5, %v771
    %v773 = vsub.f32 1.5, %v772
    %v774 = vmul.f32 %v769, %v773
    %vm775 = vweird.f32 %v698
    %vm776 = vweird.f32 %v769
    %vm777 = vmor %vm775, %vm776
    %v778 = vsel %vm777, %v769, %v774
    %v779 = vmul.f32 %v557, %v708
    %v780 = vmul.f32 %v558, %v718
    %v781 = vmul.f32 %v559, %v728
    %v782 = vmul.f32 %v560, %v738
    %v783 = vmul.f32 %v561, %v748
    %v784 = vmul.f32 %v562, %v758
    %v785 = vmul.f32 %v563, %v768
    %v786 = vmul.f32 %v564, %v778
    %v787 = vperm.slane %v62, 0
    %v788 = vmul.f32 %v779, %v787
    %v789 = vmul.f32 %v780, %v787
    %v790 = vmul.f32 %v781, %v787
    %v791 = vmul.f32 %v782, %v787
    %v792 = vmul.f32 %v783, %v787
    %v793 = vmul.f32 %v784, %v787
    %v794 = vmul.f32 %v785, %v787
    %v795 = vmul.f32 %v786, %v787
    %v796 = vperm.slane %v63, 0
    %v797 = vadd.f32 %v788, %v796
    %v798 = vadd.f32 %v789, %v796
    %v799 = vadd.f32 %v790, %v796
    %v800 = vadd.f32 %v791, %v796
    %v801 = vadd.f32 %v792, %v796
    %v802 = vadd.f32 %v793, %v796
    %v803 = vadd.f32 %v794, %v796
    %v804 = vadd.f32 %v795, %v796
    %v805 = vmax.f32 %v797, 0.0
    %v806 = vmax.f32 %v798, 0.0
    %v807 = vmax.f32 %v799, 0.0
    %v808 = vmax.f32 %v800, 0.0
    %v809 = vmax.f32 %v801, 0.0
    %v810 = vmax.f32 %v802, 0.0
    %v811 = vmax.f32 %v803, 0.0
    %v812 = vmax.f32 %v804, 0.0
    %v813 = vld [vmem:[%s5] sm:$0xff]
    %v814 = vld [vmem:[%s5 + $0x8] sm:$0xff]
    %v815 = vld [vmem:[%s5 + $0x10] sm:$0xff]
    %v816 = vld [vmem:[%s5 + $0x18] sm:$0xff]
    %v817 = vld [vmem:[%s5 + $0x20] sm:$0xff]
    %v818 = vld [vmem:[%s5 + $0x28] sm:$0xff]
    %v819 = vld [vmem:[%s5 + $0x30] sm:$0xff]
    %v820 = vld [vmem:[%s5 + $0x38] sm:$0xff]
    %v821 = vld [vmem:[%s5 + $0x40] sm:$0xff]
    %v822 = vld [vmem:[%s5 + $0x48] sm:$0xff]
    %v823 = vld [vmem:[%s5 + $0x50] sm:$0xff]
    %v824 = vld [vmem:[%s5 + $0x58] sm:$0xff]
    %v825 = vld [vmem:[%s5 + $0x60] sm:$0xff]
    %v826 = vld [vmem:[%s5 + $0x68] sm:$0xff]
    %v827 = vld [vmem:[%s5 + $0x70] sm:$0xff]
    %v828 = vld [vmem:[%s5 + $0x78] sm:$0xff]
    %v829 = vld [vmem:[%s6] sm:$0x1]
    %v831 = vperm.slane %v829, 0
    %833 = vmatpush.msra.mxu0 %v828
    %834 = vmatpush.msra.mxu0 %v827
    %835 = vmatpush.msra.mxu0 %v826
    %836 = vmatpush.msra.mxu0 %v825
    %837 = vmatpush.msra.mxu0 %v824
    %838 = vmatpush.msra.mxu0 %v823
    %839 = vmatpush.msra.mxu0 %v822
    %840 = vmatpush.msra.mxu0 %v821
    %841 = vmatpush.msra.mxu0 %v820
    %842 = vmatpush.msra.mxu0 %v819
    %843 = vmatpush.msra.mxu0 %v818
    %844 = vmatpush.msra.mxu0 %v817
    %845 = vmatpush.msra.mxu0 %v816
    %846 = vmatpush.msra.mxu0 %v815
    %847 = vmatpush.msra.mxu0 %v814
    %848 = vmatpush.msra.mxu0 %v813
    %849 = vmatmul.f32.gmra.mxu0 %v805
    %v850 = vpop.f32.mrf.mxu0
    %v851 = vadd.f32 %v831, %v850
    %852 = vmatmul.f32.gmra.mxu0 %v806
    %v853 = vpop.f32.mrf.mxu0
    %v854 = vadd.f32 %v831, %v853
    %855 = vmatmul.f32.gmra.mxu0 %v807
    %v856 = vpop.f32.mrf.mxu0
    %v857 = vadd.f32 %v831, %v856
    %858 = vmatmul.f32.gmra.mxu0 %v808
    %v859 = vpop.f32.mrf.mxu0
    %v860 = vadd.f32 %v831, %v859
    %861 = vmatmul.f32.gmra.mxu0 %v809
    %v862 = vpop.f32.mrf.mxu0
    %v863 = vadd.f32 %v831, %v862
    %864 = vmatmul.f32.gmra.mxu0 %v810
    %v865 = vpop.f32.mrf.mxu0
    %v866 = vadd.f32 %v831, %v865
    %867 = vmatmul.f32.gmra.mxu0 %v811
    %v868 = vpop.f32.mrf.mxu0
    %v869 = vadd.f32 %v831, %v868
    %870 = vmatmul.f32.gmra.mxu0 %v812
    %v871 = vpop.f32.mrf.mxu0
    %v872 = vadd.f32 %v831, %v871
    %873 = vdwg.mxu0
    %vm874 = vcmask 523264
    %875 = vst.msk [vmem:[#allocation7] sm:$0xff] %vm874, %v851
    %876 = vst.msk [vmem:[#allocation7 + $0x8] sm:$0xff] %vm874, %v854
    %877 = vst.msk [vmem:[#allocation7 + $0x10] sm:$0xff] %vm874, %v857
    %878 = vst.msk [vmem:[#allocation7 + $0x18] sm:$0xff] %vm874, %v860
    %879 = vst.msk [vmem:[#allocation7 + $0x20] sm:$0xff] %vm874, %v863
    %880 = vst.msk [vmem:[#allocation7 + $0x28] sm:$0xff] %vm874, %v866
    %881 = vst.msk [vmem:[#allocation7 + $0x30] sm:$0xff] %vm874, %v869
    %882 = vst.msk [vmem:[#allocation7 + $0x38] sm:$0xff] %vm874, %v872
    // Predicated region
    $region38: #{tpu_custom_call.1} parent=1 // pred_check
      _
    $region39: #{tpu_custom_call.1} parent=1 // pred_check_branch
      %884 = sbr.rel (0) target = $region41
    $region40: #{tpu_custom_call.1} parent=1 // pred_region
      %886 = vsyncadd [#allocation4], 0
      %s887 = sshll.u32 [#allocation7], 4
      %s888 = int_to_ptr.vmem [resolvable:$true] %s887
      %s889 = sshll.u32 %s7, 4
      %s890 = int_to_ptr.hbm [resolvable:$true] %s889
      %895 = dma.vmem_to_hbm [thread:$0]  %s888, 1024, %s890, [#allocation4], 128, 128, 8
    $region41: #{tpu_custom_call.1} parent=1 // pred_fallthru
      _
    // Predicated region
    $region42: #{tpu_custom_call.1} parent=1 // pred_check
      _
    $region43: #{tpu_custom_call.1} parent=1 // pred_check_branch
      %897 = sbr.rel (0) target = $region45
    $region44: #{tpu_custom_call.1} parent=1 // pred_region
      %899 = dma.done [#allocation4], 1024
    $region45: #{tpu_custom_call.1} parent=1 // pred_fallthru
      _
    %900 = vsyncpa [#allocation3], 1
    %901 = vsyncpa [#allocation6], 1
    %902 = vsyncpa [#allocation4], 1

</llo_original>
